<compile_context>
chip_gen: v7x
topology: tpu7x:2x2x1
jax: 0.10.0
libtpu: 0.0.40
codegen_flags: <defaults>
</compile_context>

<pallas_src>
import math

import jax
import jax.numpy as jnp
from jax.experimental import pallas as pl
from jax.experimental.pallas import tpu as pltpu


def cts_policy_kernel(x_ref, w1_ref, b1_ref, w2_ref, b2_ref, w3_ref, b3_ref,
                      mean_ref):
    # x arrives as f32; cast to the weight compute dtype (bf16) in-kernel so the
    # wrapper never does a separate cast pass over x.
    x = x_ref[...].astype(w1_ref.dtype)

    # Layer 1: Linear + Hardtanh (bias-add / clip in f32 -> portable to v5e VPU)
    h = jnp.dot(x, w1_ref[...], preferred_element_type=jnp.float32) + b1_ref[...]
    h = jnp.clip(h, -1.0, 1.0)

    # Layer 2: Linear + Hardtanh
    h = jnp.dot(h.astype(w2_ref.dtype), w2_ref[...],
                preferred_element_type=jnp.float32) + b2_ref[...]
    h = jnp.clip(h, -1.0, 1.0)

    # Mean head (no activation). Compact (tile_b, action_dim) f32 store.
    mean_ref[...] = (jnp.dot(h.astype(w3_ref.dtype), w3_ref[...],
                             preferred_element_type=jnp.float32) + b3_ref[...])


def _round_up(x, m):
    return ((x + m - 1) // m) * m


def xavier_uniform(key, shape):
    fan_in, fan_out = shape
    limit = math.sqrt(6.0 / (fan_in + fan_out))
    return jax.random.uniform(key, shape, jnp.float32, -limit, limit)


def init_cts_policy_params(key, state_dim, hidden_sizes, action_dim):
    """'xavier' init: xavier_uniform weights (stored (in, out)), zero biases."""
    sizes = (state_dim,) + tuple(hidden_sizes) + (action_dim,)
    keys = jax.random.split(key, len(sizes) - 1)
    Ws, bs = [], []
    for k, fin, fout in zip(keys, sizes[:-1], sizes[1:]):
        Ws.append(xavier_uniform(k, (fin, fout)))          # (in, out) layout
        bs.append(jnp.zeros((1, fout), jnp.float32))
    log_stdev = jnp.zeros((action_dim,), jnp.float32)
    return Ws, bs, log_stdev


def prepare_cts_policy_params(Ws, bs, log_stdev, compute_dtype=jnp.bfloat16):
    """One-time parameter prep: cast weights to the MXU compute dtype (bf16).

    Do this ONCE (at init / checkpoint load), not per forward call.
    Biases stay f32 (elementwise path is f32 for v5e portability).
    """
    w1, w2, w3 = (w.astype(compute_dtype) for w in Ws)
    b1, b2, b3 = bs
    return (w1, b1, w2, b2, w3, b3, log_stdev)


def cts_policy_forward(x, prepared_params, *, tile_b=4096, split_threshold=2048):
    """CtsPolicy.forward: (means, std) with the MLP fused in one Pallas kernel."""
    w1, b1, w2, b2, w3, b3, log_stdev = prepared_params
    B, state_dim = x.shape
    h1 = w1.shape[1]
    h2 = w2.shape[1]
    act = w3.shape[1]

    # ---- batch tiling -------------------------------------------------------
    # f32 x-block and f32 out-block -> sublane multiple of 8 on the batch dim.
    sub = 8
    B_r = _round_up(B, sub)
    tile_b = _round_up(min(tile_b, B_r), sub)
    if B_r <= tile_b and B_r >= split_threshold:
        # Large batch would otherwise be a single grid step: split into >= 2
        # steps so the "parallel" axis can feed both v7x TensorCores.
        tile_b = _round_up(-(-B_r // 2), sub)
    padded_B = _round_up(B, tile_b)
    grid = (padded_B // tile_b,)

    # Only pad x when the batch isn't tile-divisible (no dtype cast here).
    x_in = x if padded_B == B else jnp.pad(x, ((0, padded_B - B), (0, 0)))

    # ---- cost estimate (compact output, f32 x input, bf16 weights) ----------
    w_itemsize = jnp.dtype(w1.dtype).itemsize
    flops = 2 * padded_B * (state_dim * h1 + h1 * h2 + h2 * act)
    bytes_accessed = (
        padded_B * state_dim * 4                                  # x (f32)
        + (state_dim * h1 + h1 * h2 + h2 * act) * w_itemsize      # weights
        + (h1 + h2 + act) * 4                                     # biases (f32)
        + padded_B * act * 4)                                     # means (f32)

    def fixed(shape):  # parameter blocks: same full block at every grid step
        return pl.BlockSpec(shape, lambda i: (0, 0))

    mean_full = pl.pallas_call(
        cts_policy_kernel,
        out_shape=jax.ShapeDtypeStruct((padded_B, act), jnp.float32),
        grid=grid,
        in_specs=[
            pl.BlockSpec((tile_b, state_dim), lambda i: (i, 0)),   # x batch tile
            fixed((state_dim, h1)), fixed((1, h1)),                # W1, b1
            fixed((h1, h2)),        fixed((1, h2)),                # W2, b2
            fixed((h2, act)),       fixed((1, act)),               # W3, b3
        ],
        out_specs=pl.BlockSpec((tile_b, act), lambda i: (i, 0)),
        compiler_params=pltpu.CompilerParams(
            dimension_semantics=("parallel",)),
        cost_estimate=pl.CostEstimate(flops=flops, transcendentals=0,
                                      bytes_accessed=bytes_accessed),
    )(x_in, w1, b1, w2, b2, w3, b3)

    means = mean_full if padded_B == B else mean_full[:B]
    std = jnp.exp(log_stdev)               # trivial; done in XLA, not the kernel
    return means, std


def cts_policy_reference(x, Ws, bs, log_stdev, compute_dtype=jnp.bfloat16):
    """Plain-JAX reference mirroring the kernel's bf16-MXU / f32-accum rounding."""
    dot = lambda a, w: jnp.dot(a.astype(compute_dtype), w.astype(compute_dtype),
                               preferred_element_type=jnp.float32)
    h = jnp.clip(dot(x, Ws[0]) + bs[0], -1.0, 1.0)
    h = jnp.clip(dot(h, Ws[1]) + bs[1], -1.0, 1.0)
    means = dot(h, Ws[2]) + bs[2]
    std = jnp.exp(log_stdev)
    return means, std


if __name__ == "__main__":
    # Small shapes consistent with the module: state_dim=32, hidden=(64,64),
    # action_dim=8. batch=50 exercises the non-divisible-batch padding path.
    batch, state_dim, action_dim = 50, 32, 8
    hidden_sizes = (64, 64)

    key = jax.random.PRNGKey(0)
    k_params, k_x = jax.random.split(key)

    Ws, bs, log_stdev = init_cts_policy_params(k_params, state_dim, hidden_sizes,
                                               action_dim)
    params = prepare_cts_policy_params(Ws, bs, log_stdev)   # one-time bf16 cast
    x = jax.random.normal(k_x, (batch, state_dim), jnp.float32)

    means, std = cts_policy_forward(x, params)
    jax.block_until_ready((means, std))

    ref_means, ref_std = cts_policy_reference(x, Ws, bs, log_stdev)
    assert means.shape == (batch, action_dim)
    assert std.shape == (action_dim,)
    assert jnp.allclose(means, ref_means, atol=5e-4, rtol=5e-4)
    assert jnp.allclose(std, ref_std, atol=1e-6, rtol=1e-6)

    print("KERNEL_OK")
</pallas_src>

<mosaic_0001>
module attributes {stable_mosaic.version = 11 : i64} {
  func.func @cts_policy_kernel(%arg0: i32, %arg1: memref<56x32xf32, #tpu.memory_space<vmem>>, %arg2: memref<32x64xbf16, #tpu.memory_space<vmem>>, %arg3: memref<1x64xf32, #tpu.memory_space<vmem>>, %arg4: memref<64x64xbf16, #tpu.memory_space<vmem>>, %arg5: memref<1x64xf32, #tpu.memory_space<vmem>>, %arg6: memref<64x8xbf16, #tpu.memory_space<vmem>>, %arg7: memref<1x8xf32, #tpu.memory_space<vmem>>, %arg8: memref<56x8xf32, #tpu.memory_space<vmem>>) attributes {dimension_semantics = [#tpu.dimension_semantics<parallel>], iteration_bounds = array<i64: 1>, scalar_prefetch = 0 : i64, scratch_operands = 0 : i64, tpu.core_type = #tpu.core_type<tc>, window_params = [{transform_indices = @transform_0, window_bounds = array<i64: 56, 32>}, {pipeline_mode = #tpu.pipeline_mode<synchronous>, transform_indices = @transform_1, window_bounds = array<i64: 32, 64>}, {pipeline_mode = #tpu.pipeline_mode<synchronous>, transform_indices = @transform_2, window_bounds = array<i64: 1, 64>}, {pipeline_mode = #tpu.pipeline_mode<synchronous>, transform_indices = @transform_3, window_bounds = array<i64: 64, 64>}, {pipeline_mode = #tpu.pipeline_mode<synchronous>, transform_indices = @transform_4, window_bounds = array<i64: 1, 64>}, {pipeline_mode = #tpu.pipeline_mode<synchronous>, transform_indices = @transform_5, window_bounds = array<i64: 64, 8>}, {pipeline_mode = #tpu.pipeline_mode<synchronous>, transform_indices = @transform_6, window_bounds = array<i64: 1, 8>}, {transform_indices = @transform_7, window_bounds = array<i64: 56, 8>}]} {
    %c0 = arith.constant 0 : index
    %c0_0 = arith.constant 0 : index
    %0 = vector.load %arg1[%c0, %c0_0] : memref<56x32xf32, #tpu.memory_space<vmem>>, vector<56x32xf32>
    %1 = arith.truncf %0 : vector<56x32xf32> to vector<56x32xbf16>
    %c0_1 = arith.constant 0 : index
    %c0_2 = arith.constant 0 : index
    %2 = vector.load %arg2[%c0_1, %c0_2] : memref<32x64xbf16, #tpu.memory_space<vmem>>, vector<32x64xbf16>
    %cst = arith.constant dense<0.000000e+00> : vector<56x64xf32>
    %3 = tpu.matmul %1, %2, %cst {dimension_numbers = #tpu.dot_dimension_numbers<[1], [0], [0], [1], [0, 0, 1, 1], [], []>} : vector<56x32xbf16>, vector<32x64xbf16>, vector<56x64xf32> -> vector<56x64xf32>
    %c0_3 = arith.constant 0 : index
    %c0_4 = arith.constant 0 : index
    %4 = vector.load %arg3[%c0_3, %c0_4] : memref<1x64xf32, #tpu.memory_space<vmem>>, vector<1x64xf32>
    %5 = vector.broadcast %4 : vector<1x64xf32> to vector<56x64xf32>
    %6 = arith.addf %3, %5 : vector<56x64xf32>
    %cst_5 = arith.constant -1.000000e+00 : f32
    %cst_6 = arith.constant 1.000000e+00 : f32
    %7 = vector.broadcast %cst_5 : f32 to vector<56x64xf32>
    %8 = arith.maximumf %7, %6 : vector<56x64xf32>
    %9 = vector.broadcast %cst_6 : f32 to vector<56x64xf32>
    %10 = arith.minimumf %9, %8 : vector<56x64xf32>
    %11 = arith.truncf %10 : vector<56x64xf32> to vector<56x64xbf16>
    %c0_7 = arith.constant 0 : index
    %c0_8 = arith.constant 0 : index
    %12 = vector.load %arg4[%c0_7, %c0_8] : memref<64x64xbf16, #tpu.memory_space<vmem>>, vector<64x64xbf16>
    %cst_9 = arith.constant dense<0.000000e+00> : vector<56x64xf32>
    %13 = tpu.matmul %11, %12, %cst_9 {dimension_numbers = #tpu.dot_dimension_numbers<[1], [0], [0], [1], [0, 0, 1, 1], [], []>} : vector<56x64xbf16>, vector<64x64xbf16>, vector<56x64xf32> -> vector<56x64xf32>
    %c0_10 = arith.constant 0 : index
    %c0_11 = arith.constant 0 : index
    %14 = vector.load %arg5[%c0_10, %c0_11] : memref<1x64xf32, #tpu.memory_space<vmem>>, vector<1x64xf32>
    %15 = vector.broadcast %14 : vector<1x64xf32> to vector<56x64xf32>
    %16 = arith.addf %13, %15 : vector<56x64xf32>
    %cst_12 = arith.constant -1.000000e+00 : f32
    %cst_13 = arith.constant 1.000000e+00 : f32
    %17 = vector.broadcast %cst_12 : f32 to vector<56x64xf32>
    %18 = arith.maximumf %17, %16 : vector<56x64xf32>
    %19 = vector.broadcast %cst_13 : f32 to vector<56x64xf32>
    %20 = arith.minimumf %19, %18 : vector<56x64xf32>
    %21 = arith.truncf %20 : vector<56x64xf32> to vector<56x64xbf16>
    %c0_14 = arith.constant 0 : index
    %c0_15 = arith.constant 0 : index
    %22 = vector.load %arg6[%c0_14, %c0_15] : memref<64x8xbf16, #tpu.memory_space<vmem>>, vector<64x8xbf16>
    %cst_16 = arith.constant dense<0.000000e+00> : vector<56x8xf32>
    %23 = tpu.matmul %21, %22, %cst_16 {dimension_numbers = #tpu.dot_dimension_numbers<[1], [0], [0], [1], [0, 0, 1, 1], [], []>} : vector<56x64xbf16>, vector<64x8xbf16>, vector<56x8xf32> -> vector<56x8xf32>
    %c0_17 = arith.constant 0 : index
    %c0_18 = arith.constant 0 : index
    %24 = vector.load %arg7[%c0_17, %c0_18] : memref<1x8xf32, #tpu.memory_space<vmem>>, vector<1x8xf32>
    %25 = vector.broadcast %24 : vector<1x8xf32> to vector<56x8xf32>
    %26 = arith.addf %23, %25 : vector<56x8xf32>
    %c0_19 = arith.constant 0 : index
    %c0_20 = arith.constant 0 : index
    %27 = vector.load %arg8[%c0_19, %c0_20] : memref<56x8xf32, #tpu.memory_space<vmem>>, vector<56x8xf32>
    tpu.vector_store %arg8[%c0_19, %c0_20], %26 {strides = array<i32>} : memref<56x8xf32, #tpu.memory_space<vmem>>, vector<56x8xf32>,
    return
  }
  func.func @transform_0(%arg0: i32) -> (i32, i32) {
    %c0_i32 = arith.constant 0 : i32
    %c0_i32_0 = arith.constant 0 : i32
    return %arg0, %c0_i32 : i32, i32
  }
  func.func @transform_1(%arg0: i32) -> (i32, i32) {
    %c0_i32 = arith.constant 0 : i32
    %c0_i32_0 = arith.constant 0 : i32
    %c0_i32_1 = arith.constant 0 : i32
    return %c0_i32, %c0_i32_0 : i32, i32
  }
  func.func @transform_2(%arg0: i32) -> (i32, i32) {
    %c0_i32 = arith.constant 0 : i32
    %c0_i32_0 = arith.constant 0 : i32
    %c0_i32_1 = arith.constant 0 : i32
    return %c0_i32, %c0_i32_0 : i32, i32
  }
  func.func @transform_3(%arg0: i32) -> (i32, i32) {
    %c0_i32 = arith.constant 0 : i32
    %c0_i32_0 = arith.constant 0 : i32
    %c0_i32_1 = arith.constant 0 : i32
    return %c0_i32, %c0_i32_0 : i32, i32
  }
  func.func @transform_4(%arg0: i32) -> (i32, i32) {
    %c0_i32 = arith.constant 0 : i32
    %c0_i32_0 = arith.constant 0 : i32
    %c0_i32_1 = arith.constant 0 : i32
    return %c0_i32, %c0_i32_0 : i32, i32
  }
  func.func @transform_5(%arg0: i32) -> (i32, i32) {
    %c0_i32 = arith.constant 0 : i32
    %c0_i32_0 = arith.constant 0 : i32
    %c0_i32_1 = arith.constant 0 : i32
    return %c0_i32, %c0_i32_0 : i32, i32
  }
  func.func @transform_6(%arg0: i32) -> (i32, i32) {
    %c0_i32 = arith.constant 0 : i32
    %c0_i32_0 = arith.constant 0 : i32
    %c0_i32_1 = arith.constant 0 : i32
    return %c0_i32, %c0_i32_0 : i32, i32
  }
  func.func @transform_7(%arg0: i32) -> (i32, i32) {
    %c0_i32 = arith.constant 0 : i32
    %c0_i32_0 = arith.constant 0 : i32
    return %arg0, %c0_i32 : i32, i32
  }
}

</mosaic_0001>

<llo_original>
// kernel: tpu_custom_call.1
$region0: #{tpu_custom_call.1}
  #allocation0 [shape = 'u32[]', space=smem, size = 0x4, offset = 0x4, fixed_abs, tag = 'smem constant byte address 0x4 - core index']
  #allocation1 [shape = 'u32[144,128]{1,0:T(1,128)}', space=vmem, size = 0x12000, scoped, tag = 'internal scratch']
  %s0 = inlined_call_operand.vmem [shape: f32[56,32], index: 0, kind: input, shape index: {}]
  %s1 = inlined_call_operand.vmem [shape: bf16[32,64], index: 1, kind: input, shape index: {}]
  %s2 = inlined_call_operand.vmem [shape: f32[1,64], index: 2, kind: input, shape index: {}]
  %s3 = inlined_call_operand.vmem [shape: bf16[64,64], index: 3, kind: input, shape index: {}]
  %s4 = inlined_call_operand.vmem [shape: f32[1,64], index: 4, kind: input, shape index: {}]
  %s5 = inlined_call_operand.vmem [shape: bf16[64,8], index: 5, kind: input, shape index: {}]
  %s6 = inlined_call_operand.vmem [shape: f32[1,8], index: 6, kind: input, shape index: {}]
  %s7 = inlined_call_operand.vmem [shape: f32[56,8], index: 7, kind: output, shape index: {}]
  %s8 = sld [smem:[#allocation0]]
  $region38: #{tpu_custom_call.1} parent=0
    _
  %s10 = ssub.s32 1, %s8
  %s11 = scalar_select 0, %s10, %s8
  // Predicated region
  $region2: #{tpu_custom_call.1} parent=0 // pred_check
    _
  $region3: #{tpu_custom_call.1} parent=0 // pred_check_branch
    %13 = sbr.rel (0) target = $region5
  $region4: #{tpu_custom_call.1} parent=0 // pred_region
    _
  $region5: #{tpu_custom_call.1} parent=0 // pred_fallthru
    _
  // Predicated region
  $region6: #{tpu_custom_call.1} parent=0 // pred_check
    _
  $region7: #{tpu_custom_call.1} parent=0 // pred_check_branch
    %15 = sbr.rel (0) target = $region9
  $region8: #{tpu_custom_call.1} parent=0 // pred_region
    _
  $region9: #{tpu_custom_call.1} parent=0 // pred_fallthru
    _
  // Predicated region
  $region10: #{tpu_custom_call.1} parent=0 // pred_check
    _
  $region11: #{tpu_custom_call.1} parent=0 // pred_check_branch
    %17 = sbr.rel (0) target = $region13
  $region12: #{tpu_custom_call.1} parent=0 // pred_region
    _
  $region13: #{tpu_custom_call.1} parent=0 // pred_fallthru
    _
  // Predicated region
  $region14: #{tpu_custom_call.1} parent=0 // pred_check
    _
  $region15: #{tpu_custom_call.1} parent=0 // pred_check_branch
    %19 = sbr.rel (0) target = $region17
  $region16: #{tpu_custom_call.1} parent=0 // pred_region
    _
  $region17: #{tpu_custom_call.1} parent=0 // pred_fallthru
    _
  // Predicated region
  $region18: #{tpu_custom_call.1} parent=0 // pred_check
    _
  $region19: #{tpu_custom_call.1} parent=0 // pred_check_branch
    %21 = sbr.rel (0) target = $region21
  $region20: #{tpu_custom_call.1} parent=0 // pred_region
    _
  $region21: #{tpu_custom_call.1} parent=0 // pred_fallthru
    _
  // Predicated region
  $region22: #{tpu_custom_call.1} parent=0 // pred_check
    _
  $region23: #{tpu_custom_call.1} parent=0 // pred_check_branch
    %23 = sbr.rel (0) target = $region25
  $region24: #{tpu_custom_call.1} parent=0 // pred_region
    _
  $region25: #{tpu_custom_call.1} parent=0 // pred_fallthru
    _
  // Predicated region
  $region26: #{tpu_custom_call.1} parent=0 // pred_check
    _
  $region27: #{tpu_custom_call.1} parent=0 // pred_check_branch
    %25 = sbr.rel (0) target = $region29
  $region28: #{tpu_custom_call.1} parent=0 // pred_region
    _
  $region29: #{tpu_custom_call.1} parent=0 // pred_fallthru
    _
  %v27 = vld [vmem:[%s0] sm:$0xff]
  %v28 = vld [vmem:[%s0 + $0x8] sm:$0xff]
  %v29 = vld [vmem:[%s0 + $0x10] sm:$0xff]
  %v30 = vld [vmem:[%s0 + $0x18] sm:$0xff]
  %v31 = vld [vmem:[%s0 + $0x20] sm:$0xff]
  %v32 = vld [vmem:[%s0 + $0x28] sm:$0xff]
  %v33 = vld [vmem:[%s0 + $0x30] sm:$0xff]
  %v34 = vpack.c.bf16 %v28, %v27
  %v35 = vpack.c.bf16 %v30, %v29
  %v36 = vpack.c.bf16 %v32, %v31
  %v37 = vpack.c.bf16 %v33, %v33
  %v38 = vld [vmem:[%s1] sm:$0xf]
  %v39 = vld [vmem:[%s1 + $0x4] sm:$0xf]
  %v40 = vld [vmem:[%s1 + $0x8] sm:$0xf]
  %v41 = vld [vmem:[%s1 + $0xc] sm:$0xf]
  %v42 = vld [vmem:[%s2] sm:$0x1]
  %v44 = vlaneseq
  %v45 = vshrl.u32 %v44, 7
  %v46 = vsub.s32 0, %v45
  %v47 = vrot.slane %v42, %v46
  %v53 = vunpack.c.l.b16 %v38
  %v54 = vunpack.c.l.b16 %v39
  %v55 = vunpack.c.l.b16 %v40
  %v56 = vunpack.c.l.b16 %v41
  %v57 = vpack.c.b16 %v54, %v53
  %v58 = vpack.c.b16 %v56, %v55
  %vm61 = vcmask 261120
  %v63 = vsel %vm61, %v34, 0
  %v66 = vsel %vm61, %v35, 0
  %v69 = vsel %vm61, %v36, 0
  %v72 = vsel %vm61, %v37, 0
  %74 = vmatprep.subr.bf16.mxu0 0
  %75 = vmatpush1.bf16.msra.mxu0 %v57
  %76 = vmatprep.subr.bf16.mxu0 0
  %77 = vmatpush1.bf16.msra.mxu0 %v58
  %78 = vmatprep.subr.bf16.mxu0 0
  %79 = vmatpush1.bf16.msra.mxu0 0
  %80 = vmatprep.subr.bf16.mxu0 0
  %81 = vmatpush1.bf16.msra.mxu0 0
  %82 = vmatprep.subr.bf16.mxu0 0
  %83 = vmatpush1.bf16.msra.mxu0 0
  %84 = vmatprep.subr.bf16.mxu0 0
  %85 = vmatpush1.bf16.msra.mxu0 0
  %86 = vmatprep.subr.bf16.mxu0 0
  %87 = vmatpush1.bf16.msra.mxu0 0
  %88 = vmatprep.subr.bf16.mxu0 0
  %89 = vmatpush1.bf16.msra.mxu0 0
  %90 = vmatprep.subr.bf16.mxu0 0
  %91 = vmatpush1.bf16.msra.mxu0 0
  %92 = vmatprep.subr.bf16.mxu0 0
  %93 = vmatpush1.bf16.msra.mxu0 0
  %94 = vmatprep.subr.bf16.mxu0 0
  %95 = vmatpush1.bf16.msra.mxu0 0
  %96 = vmatprep.subr.bf16.mxu0 0
  %97 = vmatpush1.bf16.msra.mxu0 0
  %98 = vmatprep.subr.bf16.mxu0 0
  %99 = vmatpush1.bf16.msra.mxu0 0
  %100 = vmatprep.subr.bf16.mxu0 0
  %101 = vmatpush1.bf16.msra.mxu0 0
  %102 = vmatprep.subr.bf16.mxu0 0
  %103 = vmatpush1.bf16.msra.mxu0 0
  %104 = vmatprep.subr.bf16.mxu0 0
  %105 = vmatpush1.bf16.msra.mxu0 0
  %106 = vmatprep.mubr.bf16.mxu0 0
  %107 = vmatmul.mubr.bf16.gmra.mrb[0].mxu0 %v63
  %v108 = vpop.f32.mrb[0].mxu0
  %v109 = vadd.f32 %v47, %v108
  %v110 = vpop.f32.mrb[0].mxu0
  %v111 = vpop.f32.mrb[0].mxu0
  %v112 = vadd.f32 %v47, %v111
  %v113 = vpop.f32.mrb[0].mxu0
  %114 = vmatprep.mubr.bf16.mxu0 0
  %115 = vmatmul.mubr.bf16.gmra.mrb[0].mxu0 %v66
  %v116 = vpop.f32.mrb[0].mxu0
  %v117 = vadd.f32 %v47, %v116
  %v118 = vpop.f32.mrb[0].mxu0
  %v119 = vpop.f32.mrb[0].mxu0
  %v120 = vadd.f32 %v47, %v119
  %v121 = vpop.f32.mrb[0].mxu0
  %122 = vmatprep.mubr.bf16.mxu0 0
  %123 = vmatmul.mubr.bf16.gmra.mrb[0].mxu0 %v69
  %v124 = vpop.f32.mrb[0].mxu0
  %v125 = vadd.f32 %v47, %v124
  %v126 = vpop.f32.mrb[0].mxu0
  %v127 = vpop.f32.mrb[0].mxu0
  %v128 = vadd.f32 %v47, %v127
  %v129 = vpop.f32.mrb[0].mxu0
  %130 = vmatprep.mubr.bf16.mxu0 0
  %131 = vmatmul.mubr.bf16.gmra.mrb[0].mxu0 %v72
  %v132 = vpop.f32.mrb[0].mxu0
  %v133 = vadd.f32 %v47, %v132
  %v134 = vpop.f32.mrb[0].mxu0
  %v135 = vpop.f32.mrb[0].mxu0
  %v136 = vpop.f32.mrb[0].mxu0
  %137 = vdwg.mxu0
  %v138 = vmax.f32 %v109, -1.0
  %v139 = vmax.f32 %v112, -1.0
  %v140 = vmax.f32 %v117, -1.0
  %v141 = vmax.f32 %v120, -1.0
  %v142 = vmax.f32 %v125, -1.0
  %v143 = vmax.f32 %v128, -1.0
  %v144 = vmax.f32 %v133, -1.0
  %v145 = vmin.f32 %v138, 1.0
  %v146 = vmin.f32 %v139, 1.0
  %v147 = vmin.f32 %v140, 1.0
  %v148 = vmin.f32 %v141, 1.0
  %v149 = vmin.f32 %v142, 1.0
  %v150 = vmin.f32 %v143, 1.0
  %v151 = vmin.f32 %v144, 1.0
  %v152 = vpack.c.bf16 %v146, %v145
  %v153 = vpack.c.bf16 %v148, %v147
  %v154 = vpack.c.bf16 %v150, %v149
  %v155 = vpack.c.bf16 %v151, %v151
  %v156 = vld [vmem:[%s3] sm:$0xf]
  %v157 = vld [vmem:[%s3 + $0x4] sm:$0xf]
  %v158 = vld [vmem:[%s3 + $0x8] sm:$0xf]
  %v159 = vld [vmem:[%s3 + $0xc] sm:$0xf]
  %v160 = vld [vmem:[%s3 + $0x10] sm:$0xf]
  %v161 = vld [vmem:[%s3 + $0x14] sm:$0xf]
  %v162 = vld [vmem:[%s3 + $0x18] sm:$0xf]
  %v163 = vld [vmem:[%s3 + $0x1c] sm:$0xf]
  %v164 = vld [vmem:[%s4] sm:$0x1]
  %v166 = vlaneseq
  %v167 = vshrl.u32 %v166, 7
  %v168 = vsub.s32 0, %v167
  %v169 = vrot.slane %v164, %v168
  %v179 = vunpack.c.l.b16 %v156
  %v180 = vunpack.c.l.b16 %v157
  %v181 = vunpack.c.l.b16 %v158
  %v182 = vunpack.c.l.b16 %v159
  %v183 = vunpack.c.l.b16 %v160
  %v184 = vunpack.c.l.b16 %v161
  %v185 = vunpack.c.l.b16 %v162
  %v186 = vunpack.c.l.b16 %v163
  %v187 = vpack.c.b16 %v180, %v179
  %v188 = vpack.c.b16 %v182, %v181
  %v189 = vpack.c.b16 %v184, %v183
  %v190 = vpack.c.b16 %v186, %v185
  %vm195 = vcmask 523264
  %v197 = vsel %vm195, %v152, 0
  %v200 = vsel %vm195, %v153, 0
  %v203 = vsel %vm195, %v154, 0
  %v206 = vsel %vm195, %v155, 0
  %208 = vmatprep.subr.bf16.mxu0 0
  %209 = vmatpush1.bf16.msra.mxu0 %v187
  %210 = vmatprep.subr.bf16.mxu0 0
  %211 = vmatpush1.bf16.msra.mxu0 %v188
  %212 = vmatprep.subr.bf16.mxu0 0
  %213 = vmatpush1.bf16.msra.mxu0 %v189
  %214 = vmatprep.subr.bf16.mxu0 0
  %215 = vmatpush1.bf16.msra.mxu0 %v190
  %216 = vmatprep.subr.bf16.mxu0 0
  %217 = vmatpush1.bf16.msra.mxu0 0
  %218 = vmatprep.subr.bf16.mxu0 0
  %219 = vmatpush1.bf16.msra.mxu0 0
  %220 = vmatprep.subr.bf16.mxu0 0
  %221 = vmatpush1.bf16.msra.mxu0 0
  %222 = vmatprep.subr.bf16.mxu0 0
  %223 = vmatpush1.bf16.msra.mxu0 0
  %224 = vmatprep.subr.bf16.mxu0 0
  %225 = vmatpush1.bf16.msra.mxu0 0
  %226 = vmatprep.subr.bf16.mxu0 0
  %227 = vmatpush1.bf16.msra.mxu0 0
  %228 = vmatprep.subr.bf16.mxu0 0
  %229 = vmatpush1.bf16.msra.mxu0 0
  %230 = vmatprep.subr.bf16.mxu0 0
  %231 = vmatpush1.bf16.msra.mxu0 0
  %232 = vmatprep.subr.bf16.mxu0 0
  %233 = vmatpush1.bf16.msra.mxu0 0
  %234 = vmatprep.subr.bf16.mxu0 0
  %235 = vmatpush1.bf16.msra.mxu0 0
  %236 = vmatprep.subr.bf16.mxu0 0
  %237 = vmatpush1.bf16.msra.mxu0 0
  %238 = vmatprep.subr.bf16.mxu0 0
  %239 = vmatpush1.bf16.msra.mxu0 0
  %240 = vmatprep.mubr.bf16.mxu0 0
  %241 = vmatmul.mubr.bf16.gmra.mrb[0].mxu0 %v197
  %v242 = vpop.f32.mrb[0].mxu0
  %v243 = vadd.f32 %v169, %v242
  %v244 = vpop.f32.mrb[0].mxu0
  %v245 = vpop.f32.mrb[0].mxu0
  %v246 = vadd.f32 %v169, %v245
  %v247 = vpop.f32.mrb[0].mxu0
  %248 = vmatprep.mubr.bf16.mxu0 0
  %249 = vmatmul.mubr.bf16.gmra.mrb[0].mxu0 %v200
  %v250 = vpop.f32.mrb[0].mxu0
  %v251 = vadd.f32 %v169, %v250
  %v252 = vpop.f32.mrb[0].mxu0
  %v253 = vpop.f32.mrb[0].mxu0
  %v254 = vadd.f32 %v169, %v253
  %v255 = vpop.f32.mrb[0].mxu0
  %256 = vmatprep.mubr.bf16.mxu0 0
  %257 = vmatmul.mubr.bf16.gmra.mrb[0].mxu0 %v203
  %v258 = vpop.f32.mrb[0].mxu0
  %v259 = vadd.f32 %v169, %v258
  %v260 = vpop.f32.mrb[0].mxu0
  %v261 = vpop.f32.mrb[0].mxu0
  %v262 = vadd.f32 %v169, %v261
  %v263 = vpop.f32.mrb[0].mxu0
  %264 = vmatprep.mubr.bf16.mxu0 0
  %265 = vmatmul.mubr.bf16.gmra.mrb[0].mxu0 %v206
  %v266 = vpop.f32.mrb[0].mxu0
  %v267 = vadd.f32 %v169, %v266
  %v268 = vpop.f32.mrb[0].mxu0
  %v269 = vpop.f32.mrb[0].mxu0
  %v270 = vpop.f32.mrb[0].mxu0
  %271 = vdwg.mxu0
  %v272 = vmax.f32 %v243, -1.0
  %v273 = vmax.f32 %v246, -1.0
  %v274 = vmax.f32 %v251, -1.0
  %v275 = vmax.f32 %v254, -1.0
  %v276 = vmax.f32 %v259, -1.0
  %v277 = vmax.f32 %v262, -1.0
  %v278 = vmax.f32 %v267, -1.0
  %v279 = vmin.f32 %v272, 1.0
  %v280 = vmin.f32 %v273, 1.0
  %v281 = vmin.f32 %v274, 1.0
  %v282 = vmin.f32 %v275, 1.0
  %v283 = vmin.f32 %v276, 1.0
  %v284 = vmin.f32 %v277, 1.0
  %v285 = vmin.f32 %v278, 1.0
  %v286 = vpack.c.bf16 %v280, %v279
  %v287 = vpack.c.bf16 %v282, %v281
  %v288 = vpack.c.bf16 %v284, %v283
  %v289 = vpack.c.bf16 %v285, %v285
  %v290 = vld [vmem:[%s5] sm:$0xf]
  %v291 = vld [vmem:[%s5 + $0x4] sm:$0xf]
  %v292 = vld [vmem:[%s5 + $0x8] sm:$0xf]
  %v293 = vld [vmem:[%s5 + $0xc] sm:$0xf]
  %v294 = vld [vmem:[%s5 + $0x10] sm:$0xf]
  %v295 = vld [vmem:[%s5 + $0x14] sm:$0xf]
  %v296 = vld [vmem:[%s5 + $0x18] sm:$0xf]
  %v297 = vld [vmem:[%s5 + $0x1c] sm:$0xf]
  %v298 = vld [vmem:[%s6] sm:$0x1]
  %v300 = vlaneseq
  %v301 = vshrl.u32 %v300, 7
  %v302 = vsub.s32 0, %v301
  %v303 = vrot.slane %v298, %v302
  %v313 = vunpack.c.l.b16 %v290
  %v314 = vunpack.c.l.b16 %v291
  %v315 = vunpack.c.l.b16 %v292
  %v316 = vunpack.c.l.b16 %v293
  %v317 = vunpack.c.l.b16 %v294
  %v318 = vunpack.c.l.b16 %v295
  %v319 = vunpack.c.l.b16 %v296
  %v320 = vunpack.c.l.b16 %v297
  %v321 = vpack.c.b16 %v314, %v313
  %v322 = vpack.c.b16 %v316, %v315
  %v323 = vpack.c.b16 %v318, %v317
  %v324 = vpack.c.b16 %v320, %v319
  %v330 = vsel %vm195, %v286, 0
  %v333 = vsel %vm195, %v287, 0
  %v336 = vsel %vm195, %v288, 0
  %v339 = vsel %vm195, %v289, 0
  %341 = vmatprep.subr.bf16.mxu0 0
  %342 = vmatpush1.bf16.msra.mxu0 %v321
  %343 = vmatprep.subr.bf16.mxu0 0
  %344 = vmatpush1.bf16.msra.mxu0 %v322
  %345 = vmatprep.subr.bf16.mxu0 0
  %346 = vmatpush1.bf16.msra.mxu0 %v323
  %347 = vmatprep.subr.bf16.mxu0 0
  %348 = vmatpush1.bf16.msra.mxu0 %v324
  %349 = vmatprep.subr.bf16.mxu0 0
  %350 = vmatpush1.bf16.msra.mxu0 0
  %351 = vmatprep.subr.bf16.mxu0 0
  %352 = vmatpush1.bf16.msra.mxu0 0
  %353 = vmatprep.subr.bf16.mxu0 0
  %354 = vmatpush1.bf16.msra.mxu0 0
  %355 = vmatprep.subr.bf16.mxu0 0
  %356 = vmatpush1.bf16.msra.mxu0 0
  %357 = vmatprep.subr.bf16.mxu0 0
  %358 = vmatpush1.bf16.msra.mxu0 0
  %359 = vmatprep.subr.bf16.mxu0 0
  %360 = vmatpush1.bf16.msra.mxu0 0
  %361 = vmatprep.subr.bf16.mxu0 0
  %362 = vmatpush1.bf16.msra.mxu0 0
  %363 = vmatprep.subr.bf16.mxu0 0
  %364 = vmatpush1.bf16.msra.mxu0 0
  %365 = vmatprep.subr.bf16.mxu0 0
  %366 = vmatpush1.bf16.msra.mxu0 0
  %367 = vmatprep.subr.bf16.mxu0 0
  %368 = vmatpush1.bf16.msra.mxu0 0
  %369 = vmatprep.subr.bf16.mxu0 0
  %370 = vmatpush1.bf16.msra.mxu0 0
  %371 = vmatprep.subr.bf16.mxu0 0
  %372 = vmatpush1.bf16.msra.mxu0 0
  %373 = vmatprep.mubr.bf16.mxu0 0
  %374 = vmatmul.mubr.bf16.gmra.mrb[0].mxu0 %v330
  %v375 = vpop.f32.mrb[0].mxu0
  %v376 = vadd.f32 %v303, %v375
  %v377 = vpop.f32.mrb[0].mxu0
  %v378 = vpop.f32.mrb[0].mxu0
  %v379 = vadd.f32 %v303, %v378
  %v380 = vpop.f32.mrb[0].mxu0
  %381 = vmatprep.mubr.bf16.mxu0 0
  %382 = vmatmul.mubr.bf16.gmra.mrb[0].mxu0 %v333
  %v383 = vpop.f32.mrb[0].mxu0
  %v384 = vadd.f32 %v303, %v383
  %v385 = vpop.f32.mrb[0].mxu0
  %v386 = vpop.f32.mrb[0].mxu0
  %v387 = vadd.f32 %v303, %v386
  %v388 = vpop.f32.mrb[0].mxu0
  %389 = vmatprep.mubr.bf16.mxu0 0
  %390 = vmatmul.mubr.bf16.gmra.mrb[0].mxu0 %v336
  %v391 = vpop.f32.mrb[0].mxu0
  %v392 = vadd.f32 %v303, %v391
  %v393 = vpop.f32.mrb[0].mxu0
  %v394 = vpop.f32.mrb[0].mxu0
  %v395 = vadd.f32 %v303, %v394
  %v396 = vpop.f32.mrb[0].mxu0
  %397 = vmatprep.mubr.bf16.mxu0 0
  %398 = vmatmul.mubr.bf16.gmra.mrb[0].mxu0 %v339
  %v399 = vpop.f32.mrb[0].mxu0
  %v400 = vadd.f32 %v303, %v399
  %v401 = vpop.f32.mrb[0].mxu0
  %v402 = vpop.f32.mrb[0].mxu0
  %v403 = vpop.f32.mrb[0].mxu0
  %404 = vdwg.mxu0
  %vm405 = vcmask 64512
  %406 = vst.msk [vmem:[%s7] sm:$0xff] %vm405, %v376
  %407 = vst.msk [vmem:[%s7 + $0x8] sm:$0xff] %vm405, %v379
  %408 = vst.msk [vmem:[%s7 + $0x10] sm:$0xff] %vm405, %v384
  %409 = vst.msk [vmem:[%s7 + $0x18] sm:$0xff] %vm405, %v387
  %410 = vst.msk [vmem:[%s7 + $0x20] sm:$0xff] %vm405, %v392
  %411 = vst.msk [vmem:[%s7 + $0x28] sm:$0xff] %vm405, %v395
  %412 = vst.msk [vmem:[%s7 + $0x30] sm:$0xff] %vm405, %v400
  // Predicated region
  $region30: #{tpu_custom_call.1} parent=0 // pred_check
    _
  $region31: #{tpu_custom_call.1} parent=0 // pred_check_branch
    %414 = sbr.rel (0) target = $region33
  $region32: #{tpu_custom_call.1} parent=0 // pred_region
    _
  $region33: #{tpu_custom_call.1} parent=0 // pred_fallthru
    _
  // Predicated region
  $region34: #{tpu_custom_call.1} parent=0 // pred_check
    _
  $region35: #{tpu_custom_call.1} parent=0 // pred_check_branch
    %416 = sbr.rel (0) target = $region37
  $region36: #{tpu_custom_call.1} parent=0 // pred_region
    _
  $region37: #{tpu_custom_call.1} parent=0 // pred_fallthru
    _

</llo_original>
